<compile_context>
chip_gen: v7x
topology: tpu7x:2x2x1
jax: 0.10.0
libtpu: 0.0.40
codegen_flags: <defaults>
</compile_context>

<pallas_src>
import functools

import jax
import jax.numpy as jnp
from jax.experimental import pallas as pl
from jax.experimental.pallas import tpu as pltpu

_LANES = 128
_MAX_NATURAL_LANES = 32768        # beyond this, fall back to flatten path
_TARGET_BLOCK_BYTES = 4 << 20     # ~4 MiB per input per pipeline buffer
_NUM_CORE_SPLITS = 2              # "parallel" axis; serial (harmless) on 1-TC chips
_VMEM_LIMIT_BYTES = 32 << 20


def _round_up(x, m):
    return ((x + m - 1) // m) * m


def _l1_sum_kernel(*refs, rows, row_tile, nblocks, blocks_per_core,
                   num_splits, weighted):
    """Accumulates sum(|t - p| [* w]) into per-core lane-dense (8, lanes) partials."""
    if weighted:
        p_ref, t_ref, w_ref, o_ref, acc_ref = refs
    else:
        p_ref, t_ref, o_ref, acc_ref = refs
        w_ref = None

    c = pl.program_id(0)            # "parallel" core-split axis
    i = pl.program_id(1)            # "arbitrary" per-core block loop
    b = c * blocks_per_core + i     # global row-block index

    @pl.when(i == 0)
    def _():
        acc_ref[...] = jnp.zeros_like(acc_ref)

    def _accumulate(mask_rows):
        p = p_ref[...].astype(jnp.float32)
        t = t_ref[...].astype(jnp.float32)
        d = jnp.abs(t - p)
        if w_ref is not None:
            d = d * w_ref[...].astype(jnp.float32)
        if mask_rows:
            # Last (partial) row block: drop Pallas-padded garbage rows.
            ridx = b * row_tile + jax.lax.broadcasted_iota(jnp.int32, d.shape, 0)
            d = jnp.where(ridx < rows, d, 0.0)
        # Fold (row_tile, lanes) -> (8, lanes): pure elementwise VPU adds into a
        # tiny accumulator (no per-step cross-sublane reduction).
        acc_ref[...] += d.reshape(-1, 8, d.shape[-1]).sum(axis=0)

    last_partial = (rows % row_tile) != 0                    # static
    ragged = (blocks_per_core * num_splits) != nblocks       # static

    if last_partial:
        # Mask only on the final block; full blocks take the cheap path.
        # Invalid (padded-grid) blocks match neither condition and are skipped.
        @pl.when(b == nblocks - 1)
        def _():
            _accumulate(True)

        @pl.when(b < nblocks - 1)
        def _():
            _accumulate(False)
    elif ragged:
        @pl.when(b < nblocks)
        def _():
            _accumulate(False)
    else:
        _accumulate(False)

    @pl.when(i == pl.num_programs(1) - 1)
    def _():
        o_ref[...] = acc_ref[...]


def _as_rows_lanes(x):
    """View x as a lane-dense 2-D (rows, lanes) slab with minimal copies."""
    if (x.ndim >= 2 and 0 < x.shape[-1] <= _MAX_NATURAL_LANES
            and x.shape[-1] % _LANES == 0):
        # Collapsing leading dims is layout-free: no HBM relayout copy.
        return x.reshape(-1, x.shape[-1])
    flat = x.reshape(-1)
    pad = (-flat.shape[0]) % _LANES
    if pad:
        flat = jnp.pad(flat, (0, pad))   # <=127-elem tail; padded elems add 0
    return flat.reshape(-1, _LANES)


def _l1_weighted_sum(preds, targets, weights=None,
                     block_bytes=_TARGET_BLOCK_BYTES):
    """Returns sum(|targets - preds| [* weights]) as an f32 scalar via Pallas."""
    inputs = [_as_rows_lanes(preds), _as_rows_lanes(targets)]
    if weights is not None:
        inputs.append(_as_rows_lanes(weights))

    rows, lanes = inputs[0].shape

    # Dtype-aware row tile: keep each DMA block ~block_bytes regardless of dtype.
    itemsize = max(a.dtype.itemsize for a in inputs)
    bytes_per_row = lanes * itemsize
    max_rows_per_core = _round_up(pl.cdiv(rows, _NUM_CORE_SPLITS), 8)
    row_tile = min(block_bytes // bytes_per_row, max_rows_per_core)
    row_tile = max(8, (row_tile // 8) * 8)   # multiple of 8, >= 8

    nblocks = pl.cdiv(rows, row_tile)
    blocks_per_core = pl.cdiv(nblocks, _NUM_CORE_SPLITS)
    grid = (_NUM_CORE_SPLITS, blocks_per_core)

    def in_index(c, i):
        # Disjoint contiguous block ranges per core; clamp padded-grid steps
        # to a valid block (their contribution is skipped in-kernel).
        return (jnp.minimum(c * blocks_per_core + i, nblocks - 1), 0)

    in_specs = [pl.BlockSpec((row_tile, lanes), in_index) for _ in inputs]
    out_specs = pl.BlockSpec((8, lanes), lambda c, i: (c, 0))

    kernel = functools.partial(
        _l1_sum_kernel, rows=rows, row_tile=row_tile, nblocks=nblocks,
        blocks_per_core=blocks_per_core, num_splits=_NUM_CORE_SPLITS,
        weighted=weights is not None)

    partials = pl.pallas_call(
        kernel,
        out_shape=jax.ShapeDtypeStruct((_NUM_CORE_SPLITS * 8, lanes),
                                       jnp.float32),
        grid_spec=pltpu.PrefetchScalarGridSpec(
            num_scalar_prefetch=0,
            grid=grid,
            in_specs=in_specs,
            out_specs=out_specs,
            scratch_shapes=[pltpu.VMEM((8, lanes), jnp.float32)],
        ),
        compiler_params=pltpu.CompilerParams(
            dimension_semantics=("parallel", "arbitrary"),
            vmem_limit_bytes=_VMEM_LIMIT_BYTES,
        ),
    )(*inputs)
    # Final tiny cross-core / cross-lane reduction as scalar glue in JAX.
    return jnp.sum(partials)


def l1_loss(preds, targets, weights=None, avg_factor=None, loss_weight=1.0):
    """Pallas-backed equivalent of L1Loss.forward."""
    if targets.size == 0:
        # torch: preds.sum() * 0
        return jnp.sum(preds) * 0
    assert preds.shape == targets.shape

    total = _l1_weighted_sum(preds, targets, weights)

    if avg_factor is None:
        loss = total / jnp.float32(preds.size)
    else:
        eps = jnp.finfo(jnp.float32).eps
        loss = total / (jnp.float32(avg_factor) + eps)
    return loss * jnp.float32(loss_weight)


if __name__ == "__main__":
    key = jax.random.PRNGKey(0)
    k1, k2, k3, k4, k5, k6, k7, k8, k9, k10 = jax.random.split(key, 10)
    eps = jnp.finfo(jnp.float32).eps

    # 1) mean reduction, no weights, NCHW-like feature map (flatten path)
    x_shape = (2, 4, 16, 16)
    preds = jax.random.normal(k1, x_shape, dtype=jnp.float32)
    targets = jax.random.normal(k2, x_shape, dtype=jnp.float32)
    loss_mean = l1_loss(preds, targets, loss_weight=1.0)
    ref_mean = jnp.mean(jnp.abs(targets - preds))
    assert jnp.allclose(loss_mean, ref_mean, rtol=1e-5, atol=1e-6)

    # 2) weighted + avg_factor on the same shape
    weights = jax.random.uniform(k3, x_shape, dtype=jnp.float32)
    loss_avg = l1_loss(preds, targets, weights=weights, avg_factor=100,
                       loss_weight=2.0)
    ref_avg = jnp.sum(jnp.abs(targets - preds) * weights) / (100 + eps) * 2.0
    assert jnp.allclose(loss_avg, ref_avg, rtol=1e-5, atol=1e-6)

    # 3) 128-aligned last dim (natural, no-relayout path), 2-way core split,
    #    partial last row block (rows=296 not a multiple of the row tile)
    nat_shape = (2, 4, 37, 128)
    pn = jax.random.normal(k4, nat_shape, dtype=jnp.float32)
    tn = jax.random.normal(k5, nat_shape, dtype=jnp.float32)
    loss_nat = l1_loss(pn, tn)
    ref_nat = jnp.mean(jnp.abs(tn - pn))
    assert jnp.allclose(loss_nat, ref_nat, rtol=1e-5, atol=1e-6)

    # 4) non-128-aligned numel (lane-pad fallback path), weighted mean
    odd_shape = (3, 5, 7)
    po = jax.random.normal(k6, odd_shape, dtype=jnp.float32)
    to = jax.random.normal(k7, odd_shape, dtype=jnp.float32)
    wo = jax.random.uniform(k8, odd_shape, dtype=jnp.float32)
    loss_odd = l1_loss(po, to, weights=wo)
    ref_odd = jnp.mean(jnp.abs(to - po) * wo)
    assert jnp.allclose(loss_odd, ref_odd, rtol=1e-5, atol=1e-6)

    # 5) bf16 inputs (in-kernel cast path, dtype-aware tile sizing)
    pbf = preds.astype(jnp.bfloat16)
    tbf = targets.astype(jnp.bfloat16)
    loss_bf = l1_loss(pbf, tbf)
    ref_bf = jnp.mean(jnp.abs(tbf.astype(jnp.float32) - pbf.astype(jnp.float32)))
    assert jnp.allclose(loss_bf, ref_bf, rtol=1e-4, atol=1e-5)

    # 6) force multi-block per-core accumulation + masked final block by using
    #    a tiny block budget (row_tile=8 -> grid (2, 3) over 41 rows)
    ps = jax.random.normal(k9, (41, 128), dtype=jnp.float32)
    ts = jax.random.normal(k10, (41, 128), dtype=jnp.float32)
    sum_small = _l1_weighted_sum(ps, ts, block_bytes=4096)
    ref_small = jnp.sum(jnp.abs(ts - ps))
    assert jnp.allclose(sum_small, ref_small, rtol=1e-5, atol=1e-5)

    # 7) empty-targets early return
    loss_empty = l1_loss(jnp.zeros((0, 4), jnp.float32),
                         jnp.zeros((0, 4), jnp.float32), loss_weight=3.0)
    assert jnp.allclose(loss_empty, 0.0)

    jax.block_until_ready((loss_mean, loss_avg, loss_nat, loss_odd, loss_bf,
                           sum_small, loss_empty))
    print("KERNEL_OK")
</pallas_src>

<mosaic_0001>
module attributes {stable_mosaic.version = 11 : i64} {
  func.func @_l1_sum_kernel(%arg0: i32, %arg1: i32, %arg2: memref<8x128xf32, #tpu.memory_space<vmem>>, %arg3: memref<8x128xf32, #tpu.memory_space<vmem>>, %arg4: memref<8x128xf32, #tpu.memory_space<vmem>>, %arg5: memref<8x128xf32, #tpu.memory_space<vmem>>) attributes {dimension_semantics = [#tpu.dimension_semantics<parallel>, #tpu.dimension_semantics<arbitrary>], iteration_bounds = array<i64: 2, 1>, scalar_prefetch = 0 : i64, scratch_operands = 1 : i64, tpu.core_type = #tpu.core_type<tc>, window_params = [{transform_indices = @transform_0, window_bounds = array<i64: 8, 128>}, {transform_indices = @transform_1, window_bounds = array<i64: 8, 128>}, {transform_indices = @transform_2, window_bounds = array<i64: 8, 128>}]} {
    %c0_i32 = arith.constant 0 : i32
    %0 = arith.cmpi eq, %arg1, %c0_i32 : i32
    %1 = arith.extui %0 : i1 to i32
    %c0_i32_0 = arith.constant 0 : i32
    %2 = arith.cmpi ne, %1, %c0_i32_0 : i32
    scf.if %2 {
      %cst_10 = arith.constant 0.000000e+00 : f32
      %15 = vector.broadcast %cst_10 : f32 to vector<8x128xf32>
      %c0_11 = arith.constant 0 : index
      %c0_12 = arith.constant 0 : index
      %16 = vector.load %arg5[%c0_11, %c0_12] : memref<8x128xf32, #tpu.memory_space<vmem>>, vector<8x128xf32>
      tpu.vector_store %arg5[%c0_11, %c0_12], %15 {strides = array<i32>} : memref<8x128xf32, #tpu.memory_space<vmem>>, vector<8x128xf32>,
    } else {
    }
    %c0 = arith.constant 0 : index
    %c0_1 = arith.constant 0 : index
    %3 = vector.load %arg2[%c0, %c0_1] : memref<8x128xf32, #tpu.memory_space<vmem>>, vector<8x128xf32>
    %c0_2 = arith.constant 0 : index
    %c0_3 = arith.constant 0 : index
    %4 = vector.load %arg3[%c0_2, %c0_3] : memref<8x128xf32, #tpu.memory_space<vmem>>, vector<8x128xf32>
    %5 = arith.subf %4, %3 : vector<8x128xf32>
    %6 = math.absf %5 : vector<8x128xf32>
    %c0_4 = arith.constant 0 : index
    %c0_5 = arith.constant 0 : index
    %7 = vector.load %arg5[%c0_4, %c0_5] : memref<8x128xf32, #tpu.memory_space<vmem>>, vector<8x128xf32>
    %8 = vector.shape_cast %6 : vector<8x128xf32> to vector<1x8x128xf32>
    %cst = arith.constant dense<0.000000e+00> : vector<8x128xf32>
    %9 = vector.multi_reduction <add>, %8, %cst [0] : vector<1x8x128xf32> to vector<8x128xf32>
    %10 = arith.addf %7, %9 : vector<8x128xf32>
    %c0_6 = arith.constant 0 : index
    %c0_7 = arith.constant 0 : index
    %11 = vector.load %arg5[%c0_6, %c0_7] : memref<8x128xf32, #tpu.memory_space<vmem>>, vector<8x128xf32>
    tpu.vector_store %arg5[%c0_6, %c0_7], %10 {strides = array<i32>} : memref<8x128xf32, #tpu.memory_space<vmem>>, vector<8x128xf32>,
    %c0_i32_8 = arith.constant 0 : i32
    %12 = arith.cmpi eq, %arg1, %c0_i32_8 : i32
    %13 = arith.extui %12 : i1 to i32
    %c0_i32_9 = arith.constant 0 : i32
    %14 = arith.cmpi ne, %13, %c0_i32_9 : i32
    scf.if %14 {
      %c0_10 = arith.constant 0 : index
      %c0_11 = arith.constant 0 : index
      %15 = vector.load %arg5[%c0_10, %c0_11] : memref<8x128xf32, #tpu.memory_space<vmem>>, vector<8x128xf32>
      %c0_12 = arith.constant 0 : index
      %c0_13 = arith.constant 0 : index
      %16 = vector.load %arg4[%c0_12, %c0_13] : memref<8x128xf32, #tpu.memory_space<vmem>>, vector<8x128xf32>
      tpu.vector_store %arg4[%c0_12, %c0_13], %15 {strides = array<i32>} : memref<8x128xf32, #tpu.memory_space<vmem>>, vector<8x128xf32>,
    } else {
    }
    return
  }
  func.func @transform_0(%arg0: i32, %arg1: i32) -> (i32, i32) {
    %c1_i32 = arith.constant 1 : i32
    %0 = arith.muli %arg0, %c1_i32 : i32
    %1 = arith.addi %0, %arg1 : i32
    %c1_i32_0 = arith.constant 1 : i32
    %2 = arith.minsi %1, %c1_i32_0 : i32
    %c0_i32 = arith.constant 0 : i32
    %c0_i32_1 = arith.constant 0 : i32
    return %2, %c0_i32 : i32, i32
  }
  func.func @transform_1(%arg0: i32, %arg1: i32) -> (i32, i32) {
    %c1_i32 = arith.constant 1 : i32
    %0 = arith.muli %arg0, %c1_i32 : i32
    %1 = arith.addi %0, %arg1 : i32
    %c1_i32_0 = arith.constant 1 : i32
    %2 = arith.minsi %1, %c1_i32_0 : i32
    %c0_i32 = arith.constant 0 : i32
    %c0_i32_1 = arith.constant 0 : i32
    return %2, %c0_i32 : i32, i32
  }
  func.func @transform_2(%arg0: i32, %arg1: i32) -> (i32, i32) {
    %c0_i32 = arith.constant 0 : i32
    %c0_i32_0 = arith.constant 0 : i32
    return %arg0, %c0_i32 : i32, i32
  }
}

</mosaic_0001>

<llo_original>
// kernel: tpu_custom_call.1
$region0: #{tpu_custom_call.1}
  #allocation0 [shape = 'u32[]', space=smem, size = 0x4, offset = 0x4, fixed_abs, tag = 'smem constant byte address 0x4 - core index']
  #allocation1 [shape = 'u32[144,128]{1,0:T(1,128)}', space=vmem, size = 0x12000, scoped, tag = 'internal scratch']
  #allocation2 [shape = 'f32[8,128]{1,0:T(8,128)}', space=vmem, size = 0x1000, scoped, tag = 'scratch operand']
  %s0 = inlined_call_operand.hbm [shape: f32[16,128], index: 0, kind: input, shape index: {}]
  %s1 = inlined_call_operand.hbm [shape: f32[16,128], index: 1, kind: input, shape index: {}]
  %s2 = inlined_call_operand.hbm [shape: f32[16,128], index: 2, kind: output, shape index: {}]
  %s3 = sld [smem:[#allocation0]]
  $region57: #{tpu_custom_call.1} parent=0
    _
  %s5 = ssub.s32 1, %s3
  %s6 = scalar_select 0, %s5, %s3
  $region1: #{tpu_custom_call.1} parent=0
    #allocation3 [shape = 'u8[8192]{0}', space=vmem, size = 0x2000, scoped, tag = 'input window, operand 0']
    #allocation4 [shape = 's32[2]{0}', space=sflag, size = 0x8, scoped, tag = 'scoped memory for tpu_custom_call.1']
    #allocation5 [shape = 's32[2]{0}', space=sflag, size = 0x8, scoped, tag = 'scoped memory for tpu_custom_call.1']
    #allocation6 [shape = 'u8[8192]{0}', space=vmem, size = 0x2000, scoped, tag = 'input window, operand 1']
    #allocation7 [shape = 's32[2]{0}', space=sflag, size = 0x8, scoped, tag = 'scoped memory for tpu_custom_call.1']
    #allocation8 [shape = 'u8[8192]{0}', space=vmem, size = 0x2000, scoped, tag = 'output window, operand 0']
    %7 = vsyncpa [#allocation4], 0
    %s8 = scalar_lea.sflag [#allocation4], 1
    %9 = vsyncpa %s8, 0
    %10 = vsyncpa [#allocation7], 0
    %s11 = scalar_lea.sflag [#allocation7], 1
    %12 = vsyncpa %s11, 0
    %13 = vsyncpa [#allocation5], 0
    %s14 = scalar_lea.sflag [#allocation5], 1
    %15 = vsyncpa %s14, 0
    loop: start=0, step=1, limit=4
    $region2: #{tpu_custom_call.1} parent=1 // loop_pre_header
      _
    $region3: #{tpu_custom_call.1} parent=1 // loop_header
      %s17 = sphi 0, %s21
      %p18 = scmp.ge.s32.totalorder %s17, 4
      %s24 = sphi 0, %s36
      %s25 = sphi 0, %s32
      %s26 = sphi 0, %s24
      %s27 = sphi 0, %s25
      %s28 = sphi 0, %s26
      %s29 = sphi 0, %s27
      %s45 = sphi 0, %s47
      %s48 = sphi 0, %s45
      %s49 = sphi 0, %s48
      %s65 = sphi 0, %s49
      %s77 = sphi 0, %s79
      %s80 = sphi 0, %s77
      %s81 = sphi 0, %s80
      %s97 = sphi 0, %s81
      %s103 = sphi 0, %s105
      %s106 = sphi 0, %s103
      %s107 = sphi 0, %s106
      %s123 = sphi 0, %s107
    $region4: #{tpu_custom_call.1} parent=1 // loop_header_branch
      %20 = sbr.rel (%p18) target = $region8
    $region5: #{tpu_custom_call.1} parent=1 // loop_body
      %s22 = ssub.s32 %s17, 1
      %s23 = ssub.s32 %s17, 2
      %s30 = sadd.s32 1, %s25
      %p31 = scmp.ge.s32.totalorder %s30, 1
      %s32 = scalar_select %p31, 0, %s30
      %s33 = sadd.s32 1, %s24
      %s34 = scalar_select %p31, %s33, %s24
      %p35 = scmp.ge.s32.totalorder %s34, 2
      %s36 = scalar_select %p35, 0, %s34
      %s37 = sadd.s32 %s24, %s25
      %p38 = scmp.lt.s32.totalorder %s37, 1
      %s39 = scalar_select %p38, %s37, 1
      %s40 = sadd.s32 %s36, %s32
      %p41 = scmp.lt.s32.totalorder %s40, 1
      %s42 = scalar_select %p41, %s40, 1
      %s43 = ssub.s32 %s39, %s42
      %p44 = scmp.eq.s32.totalorder %s43, 0
      %s46 = sadd.s32 %s45, 1
      %s47 = scalar_select %p44, %s45, %s46
      %p50 = pneg %p44
      %p51 = scmp.eq.s32.totalorder %s17, 1
      %p52 = por %p50, %p51
      %p53 = scmp.ne.s32.totalorder %s45, %s48
      %p54 = scmp.eq.s32.totalorder %s17, 0
      %p55 = por %p53, %p54
      %p56 = scmp.ne.s32.totalorder %s45, %s48
      %p57 = scmp.eq.s32.totalorder %s22, 1
      %p58 = por %p56, %p57
      %p59 = scmp.ne.s32.totalorder %s48, %s49
      %p60 = scmp.eq.s32.totalorder %s22, 0
      %p61 = por %p59, %p60
      %p62 = scmp.ne.s32.totalorder %s48, %s49
      %p63 = scmp.eq.s32.totalorder %s23, 1
      %p64 = por %p62, %p63
      %p66 = scmp.ne.s32.totalorder %s49, %s65
      %p67 = scmp.eq.s32.totalorder %s23, 0
      %p68 = por %p66, %p67
      %s69 = sadd.s32 %s24, %s25
      %p70 = scmp.lt.s32.totalorder %s69, 1
      %s71 = scalar_select %p70, %s69, 1
      %s72 = sadd.s32 %s36, %s32
      %p73 = scmp.lt.s32.totalorder %s72, 1
      %s74 = scalar_select %p73, %s72, 1
      %s75 = ssub.s32 %s71, %s74
      %p76 = scmp.eq.s32.totalorder %s75, 0
      %s78 = sadd.s32 %s77, 1
      %s79 = scalar_select %p76, %s77, %s78
      %p82 = pneg %p76
      %p83 = scmp.eq.s32.totalorder %s17, 1
      %p84 = por %p82, %p83
      %p85 = scmp.ne.s32.totalorder %s77, %s80
      %p86 = scmp.eq.s32.totalorder %s17, 0
      %p87 = por %p85, %p86
      %p88 = scmp.ne.s32.totalorder %s77, %s80
      %p89 = scmp.eq.s32.totalorder %s22, 1
      %p90 = por %p88, %p89
      %p91 = scmp.ne.s32.totalorder %s80, %s81
      %p92 = scmp.eq.s32.totalorder %s22, 0
      %p93 = por %p91, %p92
      %p94 = scmp.ne.s32.totalorder %s80, %s81
      %p95 = scmp.eq.s32.totalorder %s23, 1
      %p96 = por %p94, %p95
      %p98 = scmp.ne.s32.totalorder %s81, %s97
      %p99 = scmp.eq.s32.totalorder %s23, 0
      %p100 = por %p98, %p99
      %s101 = ssub.s32 %s24, %s36
      %p102 = scmp.eq.s32.totalorder %s101, 0
      %s104 = sadd.s32 %s103, 1
      %s105 = scalar_select %p102, %s103, %s104
      %p108 = pneg %p102
      %p109 = scmp.eq.s32.totalorder %s17, 1
      %p110 = por %p108, %p109
      %p111 = scmp.ne.s32.totalorder %s103, %s106
      %p112 = scmp.eq.s32.totalorder %s17, 0
      %p113 = por %p111, %p112
      %p114 = scmp.ne.s32.totalorder %s103, %s106
      %p115 = scmp.eq.s32.totalorder %s22, 1
      %p116 = por %p114, %p115
      %p117 = scmp.ne.s32.totalorder %s106, %s107
      %p118 = scmp.eq.s32.totalorder %s22, 0
      %p119 = por %p117, %p118
      %p120 = scmp.ne.s32.totalorder %s106, %s107
      %p121 = scmp.eq.s32.totalorder %s23, 1
      %p122 = por %p120, %p121
      %p124 = scmp.ne.s32.totalorder %s107, %s123
      %p125 = scmp.eq.s32.totalorder %s23, 0
      %p126 = por %p124, %p125
      %p127 = scmp.le.s32.totalorder 1, %s17
      %p128 = scmp.lt.s32.totalorder %s17, 3
      %p129 = pnand %p127, %p128
      %p130 = pneg %p129
      // Predicated region
      $region9: #{tpu_custom_call.1} parent=5 // pred_check
        _
      $region10: #{tpu_custom_call.1} parent=5 // pred_check_branch
        %132 = sbr.rel (%p129) target = $region12
      $region11: #{tpu_custom_call.1} parent=5 // pred_region
        %s133 = ssub.s32 %s17, 1
      $region12: #{tpu_custom_call.1} parent=5 // pred_fallthru
        _
      %p134 = scmp.lt.s32.totalorder %s17, 2
      // Predicated region
      $region13: #{tpu_custom_call.1} parent=5 // pred_check
        %p135 = pneg %p134
      $region14: #{tpu_custom_call.1} parent=5 // pred_check_branch
        %137 = sbr.rel (%p135) target = $region16
      $region15: #{tpu_custom_call.1} parent=5 // pred_region
        // Predicated region
        $region17: #{tpu_custom_call.1} parent=15 // pred_check
          %p138 = pneg %p55
        $region18: #{tpu_custom_call.1} parent=15 // pred_check_branch
          %140 = sbr.rel (%p138) target = $region20
        $region19: #{tpu_custom_call.1} parent=15 // pred_region
          %s141 = sand.u32 %s45, 1
          %s142 = scalar_lea.sflag [#allocation4], %s141
          %s143 = sand.u32 %s45, 1
          %s144 = smul.addr %s143, 8
          %s145 = scalar_lea.vmem [#allocation3], %s144
          %s146 = sadd.s32 %s24, %s25
          %p147 = scmp.lt.s32.totalorder %s146, 1
          %s148 = scalar_select %p147, %s146, 1
          %s150 = ssub.s32 128, 128
          %151 = vsyncadd %s142, %s150
          %s152 = smul.addr %s148, 128
          %s153 = scalar_lea.hbm %s0, %s152
          %s155 = sshll.u32 %s145, 4
          %s156 = int_to_ptr.vmem [resolvable:$true] %s155
          %158 = dma.hbm_to_vmem [thread:$0]  %s153, 128, %s156, %s142
        $region20: #{tpu_custom_call.1} parent=15 // pred_fallthru
          _
        // Predicated region
        $region21: #{tpu_custom_call.1} parent=15 // pred_check
          %p159 = pneg %p87
        $region22: #{tpu_custom_call.1} parent=15 // pred_check_branch
          %161 = sbr.rel (%p159) target = $region24
        $region23: #{tpu_custom_call.1} parent=15 // pred_region
          %s162 = sand.u32 %s77, 1
          %s163 = scalar_lea.sflag [#allocation7], %s162
          %s164 = sand.u32 %s77, 1
          %s165 = smul.addr %s164, 8
          %s166 = scalar_lea.vmem [#allocation6], %s165
          %s167 = sadd.s32 %s24, %s25
          %p168 = scmp.lt.s32.totalorder %s167, 1
          %s169 = scalar_select %p168, %s167, 1
          %s171 = ssub.s32 128, 128
          %172 = vsyncadd %s163, %s171
          %s173 = smul.addr %s169, 128
          %s174 = scalar_lea.hbm %s1, %s173
          %s176 = sshll.u32 %s166, 4
          %s177 = int_to_ptr.vmem [resolvable:$true] %s176
          %179 = dma.hbm_to_vmem [thread:$0]  %s174, 128, %s177, %s163
        $region24: #{tpu_custom_call.1} parent=15 // pred_fallthru
          _
      $region16: #{tpu_custom_call.1} parent=5 // pred_fallthru
        _
      %p180 = scmp.le.s32.totalorder 1, %s17
      %p181 = scmp.lt.s32.totalorder %s17, 3
      %p182 = pnand %p180, %p181
      %p183 = pneg %p182
      // Predicated region
      $region25: #{tpu_custom_call.1} parent=5 // pred_check
        _
      $region26: #{tpu_custom_call.1} parent=5 // pred_check_branch
        %185 = sbr.rel (%p182) target = $region28
      $region27: #{tpu_custom_call.1} parent=5 // pred_region
        %s186 = ssub.s32 %s17, 1
        %s187 = sand.u32 %s48, 1
        %s188 = scalar_lea.sflag [#allocation4], %s187
        %s189 = sand.u32 %s48, 1
        %s190 = smul.addr %s189, 8
        %s191 = scalar_lea.vmem [#allocation3], %s190
        // Predicated region
        $region29: #{tpu_custom_call.1} parent=27 // pred_check
          %p192 = pneg %p61
        $region30: #{tpu_custom_call.1} parent=27 // pred_check_branch
          %194 = sbr.rel (%p192) target = $region32
        $region31: #{tpu_custom_call.1} parent=27 // pred_region
          %195 = dma.done %s188, 128
        $region32: #{tpu_custom_call.1} parent=27 // pred_fallthru
          _
        %s196 = sand.u32 %s80, 1
        %s197 = scalar_lea.sflag [#allocation7], %s196
        %s198 = sand.u32 %s80, 1
        %s199 = smul.addr %s198, 8
        %s200 = scalar_lea.vmem [#allocation6], %s199
        // Predicated region
        $region33: #{tpu_custom_call.1} parent=27 // pred_check
          %p201 = pneg %p93
        $region34: #{tpu_custom_call.1} parent=27 // pred_check_branch
          %203 = sbr.rel (%p201) target = $region36
        $region35: #{tpu_custom_call.1} parent=27 // pred_region
          %204 = dma.done %s197, 128
        $region36: #{tpu_custom_call.1} parent=27 // pred_fallthru
          _
        %s205 = sand.u32 %s48, 1
        %s206 = scalar_lea.sflag [#allocation4], %s205
        %s207 = sand.u32 %s48, 1
        %s208 = smul.addr %s207, 8
        %s209 = scalar_lea.vmem [#allocation3], %s208
        %p210 = pneg %p61
        %p211 = pneg %p58
        %s212 = sand.u32 %s80, 1
        %s213 = scalar_lea.sflag [#allocation7], %s212
        %s214 = sand.u32 %s80, 1
        %s215 = smul.addr %s214, 8
        %s216 = scalar_lea.vmem [#allocation6], %s215
        %p217 = pneg %p93
        %p218 = pneg %p90
        %p219 = pneg %p119
        %p220 = pneg %p116
        %s221 = sand.u32 %s106, 1
        %s222 = scalar_lea.sflag [#allocation5], %s221
        %s223 = sand.u32 %s106, 1
        %s224 = smul.addr %s223, 8
        %s225 = scalar_lea.vmem [#allocation8], %s224
        %s226 = sadd.s32 %s26, %s27
        %p227 = scmp.lt.s32.totalorder %s226, 1
        %s228 = scalar_select %p227, %s226, 1
        %s229 = sadd.s32 %s26, %s27
        %p230 = scmp.lt.s32.totalorder %s229, 1
        %s231 = scalar_select %p230, %s229, 1
        %p232 = scmp.eq.s32.totalorder %s27, 0
        // Predicated region
        $region37: #{tpu_custom_call.1} parent=27 // pred_check
          %p233 = pneg %p232
        $region38: #{tpu_custom_call.1} parent=27 // pred_check_branch
          %235 = sbr.rel (%p233) target = $region40
        $region39: #{tpu_custom_call.1} parent=27 // pred_region
          %236 = vst [vmem:[#allocation2] sm:$0xff] 0.0
        $region40: #{tpu_custom_call.1} parent=27 // pred_fallthru
          _
        %v237 = vld [vmem:[%s191] sm:$0xff]
        %v238 = vld [vmem:[%s200] sm:$0xff]
        %v239 = vsub.f32 %v238, %v237
        %v240 = vand.u32 2147483647, %v239
        %v241 = vld [vmem:[#allocation2] sm:$0xff]
        %v242 = vadd.f32 %v240, 0.0
        %v243 = vadd.f32 %v241, %v242
        %244 = vst [vmem:[#allocation2] sm:$0xff] %v243
        // Predicated region
        $region41: #{tpu_custom_call.1} parent=27 // pred_check
          %p245 = pneg %p232
        $region42: #{tpu_custom_call.1} parent=27 // pred_check_branch
          %247 = sbr.rel (%p245) target = $region44
        $region43: #{tpu_custom_call.1} parent=27 // pred_region
          %v248 = vld [vmem:[#allocation2] sm:$0xff]
          %249 = vst [vmem:[%s225] sm:$0xff] %v248
        $region44: #{tpu_custom_call.1} parent=27 // pred_fallthru
          _
        %s250 = sand.u32 %s106, 1
        %s251 = scalar_lea.sflag [#allocation5], %s250
        %s252 = sand.u32 %s106, 1
        %s253 = smul.addr %s252, 8
        %s254 = scalar_lea.vmem [#allocation8], %s253
        // Predicated region
        $region45: #{tpu_custom_call.1} parent=27 // pred_check
          %p255 = pneg %p116
        $region46: #{tpu_custom_call.1} parent=27 // pred_check_branch
          %257 = sbr.rel (%p255) target = $region48
        $region47: #{tpu_custom_call.1} parent=27 // pred_region
          %s259 = ssub.s32 128, 128
          %260 = vsyncadd %s251, %s259
          %s261 = smul.addr %s26, 128
          %s262 = scalar_lea.hbm %s2, %s261
          %s264 = sshll.u32 %s254, 4
          %s265 = int_to_ptr.vmem [resolvable:$true] %s264
          %267 = dma.vmem_to_hbm [thread:$0]  %s265, 128, %s262, %s251
        $region48: #{tpu_custom_call.1} parent=27 // pred_fallthru
          _
      $region28: #{tpu_custom_call.1} parent=5 // pred_fallthru
        _
      %p268 = scmp.le.s32.totalorder 2, %s17
      // Predicated region
      $region49: #{tpu_custom_call.1} parent=5 // pred_check
        %p269 = pneg %p268
      $region50: #{tpu_custom_call.1} parent=5 // pred_check_branch
        %271 = sbr.rel (%p269) target = $region52
      $region51: #{tpu_custom_call.1} parent=5 // pred_region
        %s272 = ssub.s32 %s17, 2
        // Predicated region
        $region53: #{tpu_custom_call.1} parent=51 // pred_check
          %p273 = pneg %p122
        $region54: #{tpu_custom_call.1} parent=51 // pred_check_branch
          %275 = sbr.rel (%p273) target = $region56
        $region55: #{tpu_custom_call.1} parent=51 // pred_region
          %s276 = sand.u32 %s107, 1
          %s277 = scalar_lea.sflag [#allocation5], %s276
          %s278 = sand.u32 %s107, 1
          %s279 = smul.addr %s278, 8
          %s280 = scalar_lea.vmem [#allocation8], %s279
          %281 = dma.done %s277, 128
        $region56: #{tpu_custom_call.1} parent=51 // pred_fallthru
          _
      $region52: #{tpu_custom_call.1} parent=5 // pred_fallthru
        _
    $region6: #{tpu_custom_call.1} parent=1 // loop_footer
      %s21 = sadd.s32 1, %s17
    $region7: #{tpu_custom_call.1} parent=1 // loop_footer_branch
      %16 = sbr.rel target = $region3
    $region8: #{tpu_custom_call.1} parent=1 // loop_exit
      _
    %282 = vsyncpa [#allocation4], 1
    %s283 = scalar_lea.sflag [#allocation4], 1
    %284 = vsyncpa %s283, 1
    %285 = vsyncpa [#allocation7], 1
    %s286 = scalar_lea.sflag [#allocation7], 1
    %287 = vsyncpa %s286, 1
    %288 = vsyncpa [#allocation5], 1
    %s289 = scalar_lea.sflag [#allocation5], 1
    %290 = vsyncpa %s289, 1

</llo_original>
